<compile_context>
chip_gen: v7x
topology: tpu7x:2x2x1
jax: 0.10.0
libtpu: 0.0.40
codegen_flags: <defaults>
</compile_context>

<pallas_src>
import random

import jax
import jax.numpy as jnp
from jax.experimental import pallas as pl
from jax.experimental.pallas import tpu as pltpu


def _round_up(x, m):
    return ((x + m - 1) // m) * m


def _mean_agg_kernel(inv_ref, mask_ref, emb_ref, out_ref):
    """grid = (i over B tiles, j over D tiles (usually 1), k over U reduction tiles)."""
    k = pl.program_id(2)

    @pl.when(k == 0)
    def _():
        out_ref[...] = jnp.zeros_like(out_ref)

    # Unnormalized partial matmul on the MXU, accumulated directly into the resident
    # f32 output tile (output BlockSpec index is constant across k).
    out_ref[...] += jnp.dot(mask_ref[...], emb_ref[...],
                            preferred_element_type=jnp.float32)

    @pl.when(k == pl.num_programs(2) - 1)
    def _():
        # Per-row 1/num_neigh precomputed on the host; epilogue-only scale.
        out_ref[...] = out_ref[...] * inv_ref[...]


def mean_aggregate(row_idx, col_idx, counts, embed_matrix, B, U,
                   *, tB=512, tU=1024, tD_max=2048):
    """
    row_idx, col_idx : int32 arrays of equal length, the (row, col) positions of the 1s
                       in the (B, U) adjacency mask.
    counts           : float32 (B,) per-row neighbor counts (len(samp_neighs[i])).
    embed_matrix     : (U, D) float features of the unique sampled neighbors.
    Returns (B, D) float32 == (mask / mask.sum(1, keepdims=True)) @ embed_matrix.
    """
    U2, D = embed_matrix.shape
    assert U == U2

    # Tile sizes: tB multiple of 16 (bf16 sublane packing), tU/tD multiples of 128.
    tB = min(tB, _round_up(B, 16))
    tU = min(tU, _round_up(U, 128))
    Dp_full = _round_up(D, 128)
    tD = min(tD_max, Dp_full)                      # default: full feature dim -> j axis = 1
    Bp, Up, Dp = _round_up(B, tB), _round_up(U, tU), _round_up(D, tD)

    # One-shot padded bf16 mask build: scatter 1.0 straight into the (Bp, Up) buffer.
    mask_p = jnp.zeros((Bp, Up), jnp.bfloat16).at[row_idx, col_idx].set(
        jnp.bfloat16(1.0))

    # Single pad+cast pass for the embedding operand (skip entirely if already aligned).
    if (U, D) == (Up, Dp) and embed_matrix.dtype == jnp.bfloat16:
        emb_p = embed_matrix
    else:
        emb_p = jnp.zeros((Up, Dp), jnp.bfloat16).at[:U, :D].set(
            embed_matrix.astype(jnp.bfloat16))

    # Host-known denominators -> padded (Bp, 1) reciprocal (0 for padded/zero-degree rows).
    counts_p = jnp.zeros((Bp,), jnp.float32).at[:B].set(counts.astype(jnp.float32))
    inv_p = jnp.where(counts_p > 0.0,
                      1.0 / jnp.maximum(counts_p, 1.0),
                      0.0).reshape(Bp, 1)

    grid = (Bp // tB, Dp // tD, Up // tU)          # reduction (U) axis last; j usually 1

    # Rough VMEM need (double-buffered inputs/outputs) with headroom, clamped for v7x.
    vmem_bytes = 2 * (tB * tU * 2 + tU * tD * 2 + tB * tD * 4 + tB * 4)
    vmem_limit = min(max(2 * vmem_bytes, 8 * 1024 * 1024), 48 * 1024 * 1024)

    out = pl.pallas_call(
        _mean_agg_kernel,
        out_shape=jax.ShapeDtypeStruct((Bp, Dp), jnp.float32),
        grid_spec=pltpu.PrefetchScalarGridSpec(
            num_scalar_prefetch=0,
            grid=grid,
            in_specs=[
                pl.BlockSpec((tB, 1), lambda i, j, k: (i, 0)),    # 1/num_neigh
                pl.BlockSpec((tB, tU), lambda i, j, k: (i, k)),   # mask tile
                pl.BlockSpec((tU, tD), lambda i, j, k: (k, j)),   # embed tile
            ],
            out_specs=pl.BlockSpec((tB, tD), lambda i, j, k: (i, j)),
        ),
        compiler_params=pltpu.CompilerParams(
            dimension_semantics=("parallel", "parallel", "arbitrary"),
            vmem_limit_bytes=vmem_limit,
        ),
    )(inv_p, mask_p, emb_p)

    return out[:B, :D]


def build_mask_indices_host(nodes, to_neighs, num_sample, rng):
    """Host-side glue identical to the PyTorch module (gcn=False, fairness=False path).

    Returns (row_idx, col_idx, counts, unique_nodes_list) instead of a dense f32 mask,
    so the padded bf16 mask can be scattered in a single pass inside mean_aggregate.
    """
    if num_sample is not None:
        samp_neighs = [
            set(rng.sample(sorted(to_neigh), num_sample))
            if len(to_neigh) >= num_sample
            else set(to_neigh)
            for to_neigh in to_neighs
        ]
    else:
        samp_neighs = [set(t) for t in to_neighs]

    unique_nodes_list = sorted(set.union(*samp_neighs))
    unique_nodes = {n: i for i, n in enumerate(unique_nodes_list)}

    col_idx = jnp.array(
        [unique_nodes[n] for samp_neigh in samp_neighs for n in samp_neigh],
        dtype=jnp.int32,
    )
    row_idx = jnp.array(
        [i for i in range(len(samp_neighs)) for _ in range(len(samp_neighs[i]))],
        dtype=jnp.int32,
    )
    counts = jnp.array([len(s) for s in samp_neighs], dtype=jnp.float32)
    return row_idx, col_idx, counts, unique_nodes_list


if __name__ == "__main__":
    # Deterministic synthetic graph + feature table (small shapes).
    NUM_GRAPH_NODES = 32   # total nodes in the graph
    FEAT_DIM = 32          # embedding dim
    BATCH = 8              # nodes in the batch
    NUM_SAMPLE = 10

    rng = random.Random(0)
    nodes = list(range(BATCH))
    to_neighs = []
    for _ in nodes:
        k = rng.randint(3, 15)  # every node has >= 3 neighbors
        to_neighs.append(set(rng.sample(range(NUM_GRAPH_NODES), k)))

    key = jax.random.PRNGKey(0)
    feature_table = jax.random.normal(
        key, (NUM_GRAPH_NODES, FEAT_DIM), dtype=jnp.float32
    )

    # Host-side sampling / index construction (pure python glue, like the module).
    row_idx, col_idx, counts, unique_nodes_list = build_mask_indices_host(
        nodes, to_neighs, NUM_SAMPLE, rng)
    B = BATCH
    U = len(unique_nodes_list)

    # features(LongTensor(unique_nodes_list)) -> embedding gather (plain JAX glue).
    embed_matrix = feature_table[jnp.array(unique_nodes_list, dtype=jnp.int32)]

    # Pallas kernel: tiled matmul + epilogue normalization with host-known counts.
    to_feats = jax.block_until_ready(
        mean_aggregate(row_idx, col_idx, counts, embed_matrix, B, U))

    # Dense f32 reference mask (reference path only).
    mask = jnp.zeros((B, U), jnp.float32).at[row_idx, col_idx].set(1.0)

    # Reference 1: identical bf16-rounded operands, f32 accumulate (kernel numerics).
    e_bf = embed_matrix.astype(jnp.bfloat16).astype(jnp.float32)
    ref_bf16 = (mask @ e_bf) / jnp.maximum(jnp.sum(mask, 1, keepdims=True), 1.0)
    # Reference 2: exact PyTorch formulation in f32 (loose tolerance for bf16 operand).
    ref_f32 = (mask / jnp.sum(mask, axis=1, keepdims=True)) @ embed_matrix

    assert to_feats.shape == (BATCH, FEAT_DIM)
    assert jnp.allclose(to_feats, ref_bf16, atol=1e-4, rtol=1e-4)
    assert jnp.allclose(to_feats, ref_f32, atol=2e-2, rtol=2e-2)

    print("KERNEL_OK")
</pallas_src>

<mosaic_0001>
module attributes {stable_mosaic.version = 11 : i64} {
  func.func @_mean_agg_kernel(%arg0: i32, %arg1: i32, %arg2: i32, %arg3: memref<16x1xf32, #tpu.memory_space<vmem>>, %arg4: memref<16x128xbf16, #tpu.memory_space<vmem>>, %arg5: memref<128x128xbf16, #tpu.memory_space<vmem>>, %arg6: memref<16x128xf32, #tpu.memory_space<vmem>>) attributes {dimension_semantics = [#tpu.dimension_semantics<parallel>, #tpu.dimension_semantics<parallel>, #tpu.dimension_semantics<arbitrary>], iteration_bounds = array<i64: 1, 1, 1>, scalar_prefetch = 0 : i64, scratch_operands = 0 : i64, tpu.core_type = #tpu.core_type<tc>, window_params = [{transform_indices = @transform_0, window_bounds = array<i64: 16, 1>}, {transform_indices = @transform_1, window_bounds = array<i64: 16, 128>}, {transform_indices = @transform_2, window_bounds = array<i64: 128, 128>}, {transform_indices = @transform_3, window_bounds = array<i64: 16, 128>}]} {
    %c0_i32 = arith.constant 0 : i32
    %0 = arith.cmpi eq, %arg2, %c0_i32 : i32
    %1 = arith.extui %0 : i1 to i32
    %c0_i32_0 = arith.constant 0 : i32
    %2 = arith.cmpi ne, %1, %c0_i32_0 : i32
    scf.if %2 {
      %cst_10 = arith.constant 0.000000e+00 : f32
      %12 = vector.broadcast %cst_10 : f32 to vector<16x128xf32>
      %c0_11 = arith.constant 0 : index
      %c0_12 = arith.constant 0 : index
      %13 = vector.load %arg6[%c0_11, %c0_12] : memref<16x128xf32, #tpu.memory_space<vmem>>, vector<16x128xf32>
      tpu.vector_store %arg6[%c0_11, %c0_12], %12 {strides = array<i32>} : memref<16x128xf32, #tpu.memory_space<vmem>>, vector<16x128xf32>,
    } else {
    }
    %c0 = arith.constant 0 : index
    %c0_1 = arith.constant 0 : index
    %3 = vector.load %arg6[%c0, %c0_1] : memref<16x128xf32, #tpu.memory_space<vmem>>, vector<16x128xf32>
    %c0_2 = arith.constant 0 : index
    %c0_3 = arith.constant 0 : index
    %4 = vector.load %arg4[%c0_2, %c0_3] : memref<16x128xbf16, #tpu.memory_space<vmem>>, vector<16x128xbf16>
    %c0_4 = arith.constant 0 : index
    %c0_5 = arith.constant 0 : index
    %5 = vector.load %arg5[%c0_4, %c0_5] : memref<128x128xbf16, #tpu.memory_space<vmem>>, vector<128x128xbf16>
    %cst = arith.constant dense<0.000000e+00> : vector<16x128xf32>
    %6 = tpu.matmul %4, %5, %cst {dimension_numbers = #tpu.dot_dimension_numbers<[1], [0], [0], [1], [0, 0, 1, 1], [], []>} : vector<16x128xbf16>, vector<128x128xbf16>, vector<16x128xf32> -> vector<16x128xf32>
    %7 = arith.addf %3, %6 : vector<16x128xf32>
    %c0_6 = arith.constant 0 : index
    %c0_7 = arith.constant 0 : index
    %8 = vector.load %arg6[%c0_6, %c0_7] : memref<16x128xf32, #tpu.memory_space<vmem>>, vector<16x128xf32>
    tpu.vector_store %arg6[%c0_6, %c0_7], %7 {strides = array<i32>} : memref<16x128xf32, #tpu.memory_space<vmem>>, vector<16x128xf32>,
    %c0_i32_8 = arith.constant 0 : i32
    %9 = arith.cmpi eq, %arg2, %c0_i32_8 : i32
    %10 = arith.extui %9 : i1 to i32
    %c0_i32_9 = arith.constant 0 : i32
    %11 = arith.cmpi ne, %10, %c0_i32_9 : i32
    scf.if %11 {
      %c0_10 = arith.constant 0 : index
      %c0_11 = arith.constant 0 : index
      %12 = vector.load %arg6[%c0_10, %c0_11] : memref<16x128xf32, #tpu.memory_space<vmem>>, vector<16x128xf32>
      %c0_12 = arith.constant 0 : index
      %c0_13 = arith.constant 0 : index
      %13 = vector.load %arg3[%c0_12, %c0_13] : memref<16x1xf32, #tpu.memory_space<vmem>>, vector<16x1xf32>
      %14 = vector.broadcast %13 : vector<16x1xf32> to vector<16x128xf32>
      %15 = arith.mulf %12, %14 : vector<16x128xf32>
      %c0_14 = arith.constant 0 : index
      %c0_15 = arith.constant 0 : index
      %16 = vector.load %arg6[%c0_14, %c0_15] : memref<16x128xf32, #tpu.memory_space<vmem>>, vector<16x128xf32>
      tpu.vector_store %arg6[%c0_14, %c0_15], %15 {strides = array<i32>} : memref<16x128xf32, #tpu.memory_space<vmem>>, vector<16x128xf32>,
    } else {
    }
    return
  }
  func.func @transform_0(%arg0: i32, %arg1: i32, %arg2: i32) -> (i32, i32) {
    %c0_i32 = arith.constant 0 : i32
    %c0_i32_0 = arith.constant 0 : i32
    return %arg0, %c0_i32 : i32, i32
  }
  func.func @transform_1(%arg0: i32, %arg1: i32, %arg2: i32) -> (i32, i32) {
    %c0_i32 = arith.constant 0 : i32
    return %arg0, %arg2 : i32, i32
  }
  func.func @transform_2(%arg0: i32, %arg1: i32, %arg2: i32) -> (i32, i32) {
    %c0_i32 = arith.constant 0 : i32
    return %arg2, %arg1 : i32, i32
  }
  func.func @transform_3(%arg0: i32, %arg1: i32, %arg2: i32) -> (i32, i32) {
    %c0_i32 = arith.constant 0 : i32
    return %arg0, %arg1 : i32, i32
  }
}

</mosaic_0001>

<llo_original>
// kernel: tpu_custom_call.1
$region0: #{tpu_custom_call.1}
  #allocation0 [shape = 'u32[]', space=smem, size = 0x4, offset = 0x4, fixed_abs, tag = 'smem constant byte address 0x4 - core index']
  #allocation1 [shape = 'u32[144,128]{1,0:T(1,128)}', space=vmem, size = 0x12000, scoped, tag = 'internal scratch']
  %s0 = inlined_call_operand.vmem [shape: f32[16,1], index: 0, kind: input, shape index: {}]
  %s1 = inlined_call_operand.vmem [shape: bf16[16,128], index: 1, kind: input, shape index: {}]
  %s2 = inlined_call_operand.hbm [shape: bf16[128,128], index: 2, kind: input, shape index: {}]
  %s3 = inlined_call_operand.hbm [shape: f32[16,128], index: 3, kind: output, shape index: {}]
  %s4 = sld [smem:[#allocation0]]
  $region34: #{tpu_custom_call.1} parent=0
    _
  %s6 = ssub.s32 1, %s4
  %s7 = scalar_select 0, %s6, %s4
  $region1: #{tpu_custom_call.1} parent=0
    #allocation2 [shape = 'u8[32768]{0}', space=vmem, size = 0x8000, scoped, tag = 'input window, operand 2, single buffered']
    #allocation3 [shape = 's32[1]{0}', space=sflag, size = 0x4, scoped, tag = 'scoped memory for tpu_custom_call.1']
    #allocation4 [shape = 's32[1]{0}', space=sflag, size = 0x4, scoped, tag = 'scoped memory for tpu_custom_call.1']
    #allocation5 [shape = 'u8[8192]{0}', space=vmem, size = 0x2000, scoped, tag = 'output window, operand 0, single buffered']
    %8 = vsyncpa [#allocation3], 0
    %9 = vsyncpa [#allocation4], 0
    // Predicated region
    $region2: #{tpu_custom_call.1} parent=1 // pred_check
      _
    $region3: #{tpu_custom_call.1} parent=1 // pred_check_branch
      %11 = sbr.rel (0) target = $region5
    $region4: #{tpu_custom_call.1} parent=1 // pred_region
      _
    $region5: #{tpu_custom_call.1} parent=1 // pred_fallthru
      _
    // Predicated region
    $region6: #{tpu_custom_call.1} parent=1 // pred_check
      _
    $region7: #{tpu_custom_call.1} parent=1 // pred_check_branch
      %13 = sbr.rel (0) target = $region9
    $region8: #{tpu_custom_call.1} parent=1 // pred_region
      _
    $region9: #{tpu_custom_call.1} parent=1 // pred_fallthru
      _
    // Predicated region
    $region10: #{tpu_custom_call.1} parent=1 // pred_check
      _
    $region11: #{tpu_custom_call.1} parent=1 // pred_check_branch
      %15 = sbr.rel (0) target = $region13
    $region12: #{tpu_custom_call.1} parent=1 // pred_region
      %s17 = ssub.s32 1024, 1024
      %18 = vsyncadd [#allocation3], %s17
      %s19 = sshll.u32 [#allocation2], 4
      %s20 = int_to_ptr.vmem [resolvable:$true] %s19
      %25 = dma.hbm_to_vmem [thread:$0]  %s2, 1024, %s20, [#allocation3], 64, 64, 4
    $region13: #{tpu_custom_call.1} parent=1 // pred_fallthru
      _
    // Predicated region
    $region14: #{tpu_custom_call.1} parent=1 // pred_check
      _
    $region15: #{tpu_custom_call.1} parent=1 // pred_check_branch
      %27 = sbr.rel (0) target = $region17
    $region16: #{tpu_custom_call.1} parent=1 // pred_region
      %28 = dma.done [#allocation3], 1024
    $region17: #{tpu_custom_call.1} parent=1 // pred_fallthru
      _
    %p30 = scmp.eq.s32.totalorder 0, 0
    // Predicated region
    $region18: #{tpu_custom_call.1} parent=1 // pred_check
      %p31 = pneg %p30
    $region19: #{tpu_custom_call.1} parent=1 // pred_check_branch
      %33 = sbr.rel (%p31) target = $region21
    $region20: #{tpu_custom_call.1} parent=1 // pred_region
      %34 = vst [vmem:[#allocation5] sm:$0xff] 0.0
      %35 = vst [vmem:[#allocation5 + $0x8] sm:$0xff] 0.0
    $region21: #{tpu_custom_call.1} parent=1 // pred_fallthru
      _
    %v36 = vld [vmem:[#allocation5] sm:$0xff]
    %v37 = vld [vmem:[#allocation5 + $0x8] sm:$0xff]
    %v38 = vld [vmem:[%s1] sm:$0xf]
    %v39 = vld [vmem:[%s1 + $0x4] sm:$0xf]
    %v40 = vld [vmem:[#allocation2] sm:$0xf]
    %v41 = vld [vmem:[#allocation2 + $0x4] sm:$0xf]
    %v42 = vld [vmem:[#allocation2 + $0x8] sm:$0xf]
    %v43 = vld [vmem:[#allocation2 + $0xc] sm:$0xf]
    %v44 = vld [vmem:[#allocation2 + $0x10] sm:$0xf]
    %v45 = vld [vmem:[#allocation2 + $0x14] sm:$0xf]
    %v46 = vld [vmem:[#allocation2 + $0x18] sm:$0xf]
    %v47 = vld [vmem:[#allocation2 + $0x1c] sm:$0xf]
    %v48 = vld [vmem:[#allocation2 + $0x20] sm:$0xf]
    %v49 = vld [vmem:[#allocation2 + $0x24] sm:$0xf]
    %v50 = vld [vmem:[#allocation2 + $0x28] sm:$0xf]
    %v51 = vld [vmem:[#allocation2 + $0x2c] sm:$0xf]
    %v52 = vld [vmem:[#allocation2 + $0x30] sm:$0xf]
    %v53 = vld [vmem:[#allocation2 + $0x34] sm:$0xf]
    %v54 = vld [vmem:[#allocation2 + $0x38] sm:$0xf]
    %v55 = vld [vmem:[#allocation2 + $0x3c] sm:$0xf]
    %v58 = vunpack.c.l.b16 %v38
    %v59 = vunpack.c.l.b16 %v39
    %v60 = vpack.c.b16 %v59, %v58
    %v78 = vunpack.c.l.b16 %v40
    %v79 = vunpack.c.l.b16 %v41
    %v80 = vunpack.c.l.b16 %v42
    %v81 = vunpack.c.l.b16 %v43
    %v82 = vunpack.c.l.b16 %v44
    %v83 = vunpack.c.l.b16 %v45
    %v84 = vunpack.c.l.b16 %v46
    %v85 = vunpack.c.l.b16 %v47
    %v86 = vunpack.c.l.b16 %v48
    %v87 = vunpack.c.l.b16 %v49
    %v88 = vunpack.c.l.b16 %v50
    %v89 = vunpack.c.l.b16 %v51
    %v90 = vunpack.c.l.b16 %v52
    %v91 = vunpack.c.l.b16 %v53
    %v92 = vunpack.c.l.b16 %v54
    %v93 = vunpack.c.l.b16 %v55
    %v94 = vpack.c.b16 %v79, %v78
    %v95 = vpack.c.b16 %v81, %v80
    %v96 = vpack.c.b16 %v83, %v82
    %v97 = vpack.c.b16 %v85, %v84
    %v98 = vpack.c.b16 %v87, %v86
    %v99 = vpack.c.b16 %v89, %v88
    %v100 = vpack.c.b16 %v91, %v90
    %v101 = vpack.c.b16 %v93, %v92
    %110 = vmatprep.subr.bf16.mxu0 0
    %111 = vmatpush1.bf16.msra.mxu0 %v94
    %112 = vmatprep.subr.bf16.mxu0 0
    %113 = vmatpush1.bf16.msra.mxu0 %v95
    %114 = vmatprep.subr.bf16.mxu0 0
    %115 = vmatpush1.bf16.msra.mxu0 %v96
    %116 = vmatprep.subr.bf16.mxu0 0
    %117 = vmatpush1.bf16.msra.mxu0 %v97
    %118 = vmatprep.subr.bf16.mxu0 0
    %119 = vmatpush1.bf16.msra.mxu0 %v98
    %120 = vmatprep.subr.bf16.mxu0 0
    %121 = vmatpush1.bf16.msra.mxu0 %v99
    %122 = vmatprep.subr.bf16.mxu0 0
    %123 = vmatpush1.bf16.msra.mxu0 %v100
    %124 = vmatprep.subr.bf16.mxu0 0
    %125 = vmatpush1.bf16.msra.mxu0 %v101
    %126 = vmatprep.subr.bf16.mxu0 0
    %127 = vmatpush1.bf16.msra.mxu0 0
    %128 = vmatprep.subr.bf16.mxu0 0
    %129 = vmatpush1.bf16.msra.mxu0 0
    %130 = vmatprep.subr.bf16.mxu0 0
    %131 = vmatpush1.bf16.msra.mxu0 0
    %132 = vmatprep.subr.bf16.mxu0 0
    %133 = vmatpush1.bf16.msra.mxu0 0
    %134 = vmatprep.subr.bf16.mxu0 0
    %135 = vmatpush1.bf16.msra.mxu0 0
    %136 = vmatprep.subr.bf16.mxu0 0
    %137 = vmatpush1.bf16.msra.mxu0 0
    %138 = vmatprep.subr.bf16.mxu0 0
    %139 = vmatpush1.bf16.msra.mxu0 0
    %140 = vmatprep.subr.bf16.mxu0 0
    %141 = vmatpush1.bf16.msra.mxu0 0
    %142 = vmatprep.mubr.bf16.mxu0 0
    %143 = vmatmul.mubr.bf16.gmra.mrb[0].mxu0 %v60
    %v144 = vpop.f32.mrb[0].mxu0
    %v145 = vadd.f32 0.0, %v144
    %v146 = vpop.f32.mrb[0].mxu0
    %v147 = vpop.f32.mrb[0].mxu0
    %v148 = vadd.f32 0.0, %v147
    %v149 = vpop.f32.mrb[0].mxu0
    %150 = vdwg.mxu0
    %v151 = vadd.f32 %v36, %v145
    %v152 = vadd.f32 %v37, %v148
    %153 = vst [vmem:[#allocation5] sm:$0xff] %v151
    %154 = vst [vmem:[#allocation5 + $0x8] sm:$0xff] %v152
    // Predicated region
    $region22: #{tpu_custom_call.1} parent=1 // pred_check
      %p155 = pneg %p30
    $region23: #{tpu_custom_call.1} parent=1 // pred_check_branch
      %157 = sbr.rel (%p155) target = $region25
    $region24: #{tpu_custom_call.1} parent=1 // pred_region
      %v158 = vld [vmem:[#allocation5] sm:$0xff]
      %v159 = vld [vmem:[#allocation5 + $0x8] sm:$0xff]
      %v160 = vld [vmem:[%s0] sm:$0xff]
      %v161 = vld [vmem:[%s0 + $0x8] sm:$0xff]
      %163 = vset.pattern.permute.xlu0 0
      %164 = vperm.xlu0 %163, %v160
      %v165 = vpop.permute.xlu0 %164
      %168 = vset.pattern.permute.xlu0 0
      %169 = vperm.xlu0 %168, %v161
      %v170 = vpop.permute.xlu0 %169
      %v172 = vmul.f32 %v158, %v165
      %v173 = vmul.f32 %v159, %v170
      %174 = vst [vmem:[#allocation5] sm:$0xff] %v172
      %175 = vst [vmem:[#allocation5 + $0x8] sm:$0xff] %v173
    $region25: #{tpu_custom_call.1} parent=1 // pred_fallthru
      _
    // Predicated region
    $region26: #{tpu_custom_call.1} parent=1 // pred_check
      _
    $region27: #{tpu_custom_call.1} parent=1 // pred_check_branch
      %177 = sbr.rel (0) target = $region29
    $region28: #{tpu_custom_call.1} parent=1 // pred_region
      %s179 = ssub.s32 256, 256
      %180 = vsyncadd [#allocation4], %s179
      %s181 = sshll.u32 [#allocation5], 4
      %s182 = int_to_ptr.vmem [resolvable:$true] %s181
      %187 = dma.vmem_to_hbm [thread:$0]  %s182, 256, %s3, [#allocation4], 128, 128, 8
    $region29: #{tpu_custom_call.1} parent=1 // pred_fallthru
      _
    // Predicated region
    $region30: #{tpu_custom_call.1} parent=1 // pred_check
      _
    $region31: #{tpu_custom_call.1} parent=1 // pred_check_branch
      %189 = sbr.rel (0) target = $region33
    $region32: #{tpu_custom_call.1} parent=1 // pred_region
      %190 = dma.done [#allocation4], 256
    $region33: #{tpu_custom_call.1} parent=1 // pred_fallthru
      _
    %191 = vsyncpa [#allocation3], 1
    %192 = vsyncpa [#allocation4], 1

</llo_original>
